<compile_context>
chip_gen: v7x
topology: tpu7x:2x2x1
jax: 0.10.0
libtpu: 0.0.40
codegen_flags: <defaults>
</compile_context>

<pallas_src>
import math
import functools

import jax
import jax.numpy as jnp
import numpy as np
from jax.experimental import pallas as pl
from jax.experimental.pallas import tpu as pltpu

TIMESTAMP_COLUMN = 0
X_COLUMN = 1
Y_COLUMN = 2
POLARITY_COLUMN = 3


def _round_up(a, b):
    return (a + b - 1) // b * b


def _st_embed_kernel(patches_ref, u_ref, w_sp_ref, w_te_ref, b_ref,
                     gamma_ref, beta_ref, o_ref, *, cout, eps):
    """Fused per-event spatiotemporal embedding for one row tile.

    patches_ref: (TILE_M, K_pad)     bf16  im2col receptive field per event
    u_ref:       (TILE_M, 8)         f32   [t*p, p, t*(1-p), 1-p, 0...]
    w_sp_ref:    (K_pad, Cout_pad)   bf16  folded conv+proj weight (zero-padded lanes)
    w_te_ref:    (8, Cout_pad)       f32   folded temporal+proj weight
    b_ref:       (1, Cout_pad)       f32   folded conv-bias+proj
    gamma/beta:  (1, Cout_pad)       f32   LayerNorm affine (zero-padded lanes)
    o_ref:       (TILE_M, Cout_pad)  bf16  lane-dense output
    """
    # Everything before LayerNorm is linear -> single fused pre-activation.
    y = jnp.dot(patches_ref[...], w_sp_ref[...],
                preferred_element_type=jnp.float32)
    y = y + jnp.dot(u_ref[...], w_te_ref[...],
                    preferred_element_type=jnp.float32)
    y = y + b_ref[...]
    # Padded lanes of y are exact zeros (zero-padded weights/bias), so one-pass
    # LN stats over the 128-lane block just divide by the real channel count.
    inv_c = jnp.float32(1.0 / cout)
    mu = jnp.sum(y, axis=-1, keepdims=True) * inv_c
    ex2 = jnp.sum(y * y, axis=-1, keepdims=True) * inv_c
    var = jnp.maximum(ex2 - mu * mu, 0.0)
    out = (y - mu) * jax.lax.rsqrt(var + eps) * gamma_ref[...] + beta_ref[...]
    o_ref[...] = out.astype(o_ref.dtype)   # padded lanes stay 0 (gamma=beta=0 there)


class SpatiotemporalEmbeddingPallas:
    """Pallas/TPU forward pass of the PyTorch SpatiotemporalEmbedding module."""

    def __init__(self, height, width, spatial_size, temporal_size, out_channel,
                 filter_size=9, *, key):
        self.height, self.width = height, width
        self.csp, self.cte, self.cout = spatial_size, temporal_size, out_channel
        self.f = filter_size
        self.cin = 2                      # SpatialEmbedding uses in_channel=0 -> (pos, neg)
        self.eps = 1e-5                   # nn.LayerNorm default

        k = jax.random.split(key, 7)
        K = filter_size * filter_size * self.cin
        self.K = K
        self.K_pad = _round_up(K, 16)                 # bf16 sublane packing
        self.cout_pad = _round_up(out_channel, 128)   # lane-dense output

        # Raw module parameters (kept for the reference check).
        self.wc = (jax.random.normal(k[0], (K, spatial_size), jnp.float32)
                   * math.sqrt(2.0 / K))                       # (ky,kx,cin) x Csp
        self.bc = jax.random.normal(k[1], (spatial_size,), jnp.float32) * 0.01
        self.w_pos = jax.random.normal(k[2], (temporal_size,), jnp.float32)
        self.b_pos = jax.random.normal(k[3], (temporal_size,), jnp.float32) * 0.1
        self.w_neg = jax.random.normal(k[4], (temporal_size,), jnp.float32)
        self.b_neg = jax.random.normal(k[5], (temporal_size,), jnp.float32) * 0.1
        self.w_proj = (jax.random.normal(
            k[6], (spatial_size + temporal_size, out_channel), jnp.float32)
            * math.sqrt(1.0 / (spatial_size + temporal_size)))
        self.gamma = jnp.ones((out_channel,), jnp.float32)
        self.beta = jnp.zeros((out_channel,), jnp.float32)

        # --- fold the (bias-free) projection into the weights offline ---
        csp, cte, cout = spatial_size, temporal_size, out_channel
        cpad = self.cout_pad - cout
        w_sp = self.wc @ self.w_proj[:csp]                                 # (K, Cout)
        self.w_sp_eff = jnp.pad(
            w_sp, ((0, self.K_pad - K), (0, cpad))).astype(jnp.bfloat16)   # (K_pad, Cout_pad)
        wt = jnp.stack([self.w_pos, self.b_pos, self.w_neg, self.b_neg], 0)  # (4, Cte)
        w_te = wt @ self.w_proj[csp:]                                      # (4, Cout)
        self.w_te_eff = jnp.pad(w_te, ((0, 4), (0, cpad)))                 # (8, Cout_pad) f32
        self.b_eff = jnp.pad(self.bc @ self.w_proj[:csp],
                             (0, cpad)).reshape(1, self.cout_pad)
        self.gamma_p = jnp.pad(self.gamma, (0, cpad)).reshape(1, self.cout_pad)
        self.beta_p = jnp.pad(self.beta, (0, cpad)).reshape(1, self.cout_pad)

    # event2image coordinate quantization (matches torch.round(y*H), round(x*W)).
    def _event_coords(self, xytp):
        B, N, _ = xytp.shape
        H, W = self.height, self.width
        y = jnp.round(xytp[..., Y_COLUMN] * H).astype(jnp.int32).reshape(-1)
        x = jnp.round(xytp[..., X_COLUMN] * W).astype(jnp.int32).reshape(-1)
        y = jnp.clip(y, 0, H - 1)
        x = jnp.clip(x, 0, W - 1)
        b = jnp.repeat(jnp.arange(B, dtype=jnp.int32), N)
        return b, y, x

    def __call__(self, xytp):
        B, N, _ = xytp.shape
        M = B * N
        H, W, f, cin = self.height, self.width, self.f, self.cin
        cout, cout_pad, K, K_pad = self.cout, self.cout_pad, self.K, self.K_pad

        pol = xytp[..., POLARITY_COLUMN].reshape(-1)
        t = xytp[..., TIMESTAMP_COLUMN].reshape(-1)
        b, y, x = self._event_coords(xytp)

        # TODO(synk): scn.InputLayer(mode=3) scatter-add (duplicate-coord sum) and the
        # per-event receptive-field gather are data-dependent; kept as XLA glue.
        feat = jnp.stack([pol, 1.0 - pol], axis=-1)                      # (M, 2)
        img = jnp.zeros((B, H, W, cin), jnp.float32).at[b, y, x].add(feat)
        pad = (f - 1) // 2
        # Cast BEFORE the gather so the big (m_pad, K) tensor is produced in bf16 once.
        img_p = jnp.pad(img, ((0, 0), (pad, pad), (pad, pad), (0, 0))
                        ).astype(jnp.bfloat16)

        # Row tiling: up to 1024 rows/step, even step count (v7x: 2 TCs), tile >= 16.
        tile_m = min(1024, max(16, _round_up(pl.cdiv(M, 2), 16)))
        m_pad = _round_up(M, 2 * tile_m)
        grid_m = m_pad // tile_m

        # Pre-pad the small per-event vectors so the gathered tensors are already m_pad tall.
        pm = m_pad - M
        b_p, y_p, x_p = (jnp.pad(v, (0, pm)) for v in (b, y, x))
        t_p, pol_p = jnp.pad(t, (0, pm)), jnp.pad(pol, (0, pm))

        # Per-event im2col: submanifold conv at an active site == dense conv there.
        kk = jnp.arange(f, dtype=jnp.int32)
        rows = y_p[:, None, None] + kk[None, :, None]                    # (m_pad, f, 1)
        cols = x_p[:, None, None] + kk[None, None, :]                    # (m_pad, 1, f)
        patches = img_p[b_p[:, None, None], rows, cols, :]               # (m_pad, f, f, cin)
        patches = patches.reshape(m_pad, K)
        patches = jnp.pad(patches, ((0, 0), (0, K_pad - K)))             # bf16, 16-aligned K

        # Temporal features: Fte = [t*p, p, t*(1-p), 1-p] @ [w_pos; b_pos; w_neg; b_neg].
        z = jnp.zeros_like(pol_p)
        u = jnp.stack([t_p * pol_p, pol_p, t_p * (1.0 - pol_p), 1.0 - pol_p,
                       z, z, z, z], axis=-1)                             # (m_pad, 8) f32

        flops = int(2 * m_pad * (K_pad + 8) * cout_pad)
        bytes_accessed = int(m_pad * (K_pad * 2 + 8 * 4 + cout_pad * 2)
                             + K_pad * cout_pad * 2 + 8 * cout_pad * 4
                             + 3 * cout_pad * 4)
        cost = pl.CostEstimate(flops=flops, transcendentals=int(m_pad),
                               bytes_accessed=bytes_accessed)

        kernel = functools.partial(_st_embed_kernel, cout=cout, eps=self.eps)
        out = pl.pallas_call(
            kernel,
            out_shape=jax.ShapeDtypeStruct((m_pad, cout_pad), jnp.bfloat16),
            grid=(grid_m,),
            in_specs=[
                pl.BlockSpec((tile_m, K_pad), lambda i: (i, 0)),     # patches (bf16)
                pl.BlockSpec((tile_m, 8), lambda i: (i, 0)),         # temporal feats
                pl.BlockSpec((K_pad, cout_pad), lambda i: (0, 0)),   # folded conv+proj (bf16)
                pl.BlockSpec((8, cout_pad), lambda i: (0, 0)),       # folded temporal+proj
                pl.BlockSpec((1, cout_pad), lambda i: (0, 0)),       # folded bias
                pl.BlockSpec((1, cout_pad), lambda i: (0, 0)),       # LN gamma (padded)
                pl.BlockSpec((1, cout_pad), lambda i: (0, 0)),       # LN beta (padded)
            ],
            out_specs=pl.BlockSpec((tile_m, cout_pad), lambda i: (i, 0)),
            compiler_params=pltpu.CompilerParams(
                dimension_semantics=("parallel",),
                vmem_limit_bytes=32 * 1024 * 1024),
            cost_estimate=cost,
        )(patches, u, self.w_sp_eff, self.w_te_eff, self.b_eff,
          self.gamma_p, self.beta_p)

        return out[:M, :cout].astype(jnp.float32).reshape(B, N, cout)


if __name__ == "__main__":
    key = jax.random.PRNGKey(0)
    k_param, k_t, k_xy, k_p = jax.random.split(key, 4)

    B, N = 2, 8
    H = W = 16
    spatial_size, temporal_size, out_channel = 16, 16, 32
    filter_size = 9                       # SpatialEmbedding default

    model = SpatiotemporalEmbeddingPallas(H, W, spatial_size, temporal_size,
                                          out_channel, filter_size, key=k_param)

    t = jax.random.uniform(k_t, (B, N, 1), dtype=jnp.float32)
    xy = jax.random.uniform(k_xy, (B, N, 2), dtype=jnp.float32,
                            minval=0.0, maxval=0.9)
    p = jax.random.bernoulli(k_p, 0.5, (B, N, 1)).astype(jnp.float32)
    xytp = jnp.concatenate([t, xy, p], axis=-1)         # columns [t, x, y, polarity]

    out = jax.block_until_ready(model(xytp))
    assert out.shape == (B, N, out_channel), out.shape

    # ---- plain-XLA f32 reference of the full module forward ----
    pol = xytp[..., POLARITY_COLUMN].reshape(-1)
    tt = xytp[..., TIMESTAMP_COLUMN].reshape(-1)
    b, y, x = model._event_coords(xytp)
    feat = jnp.stack([pol, 1.0 - pol], axis=-1)
    img = jnp.zeros((B, H, W, 2), jnp.float32).at[b, y, x].add(feat)
    wk = model.wc.reshape(filter_size, filter_size, 2, spatial_size)
    conv = jax.lax.conv_general_dilated(
        img, wk, (1, 1), "SAME",
        dimension_numbers=("NHWC", "HWIO", "NHWC"),
        precision=jax.lax.Precision.HIGHEST) + model.bc
    fsp = conv[b, y, x]
    fte = ((tt * pol)[:, None] * model.w_pos + pol[:, None] * model.b_pos
           + (tt * (1.0 - pol))[:, None] * model.w_neg
           + (1.0 - pol)[:, None] * model.b_neg)
    fcat = jnp.concatenate([fsp, fte], axis=-1)
    yproj = fcat @ model.w_proj
    mu = yproj.mean(-1, keepdims=True)
    var = ((yproj - mu) ** 2).mean(-1, keepdims=True)
    ref = ((yproj - mu) / jnp.sqrt(var + 1e-5)) * model.gamma + model.beta
    ref = ref.reshape(B, N, out_channel)

    np.testing.assert_allclose(np.asarray(out), np.asarray(ref),
                               atol=3e-2, rtol=3e-2)
    print("KERNEL_OK")
</pallas_src>

<mosaic_0001>
module attributes {stable_mosaic.version = 11 : i64} {
  func.func @_st_embed_kernel(%arg0: i32, %arg1: memref<16x176xbf16, #tpu.memory_space<vmem>>, %arg2: memref<16x8xf32, #tpu.memory_space<vmem>>, %arg3: memref<176x128xbf16, #tpu.memory_space<vmem>>, %arg4: memref<8x128xf32, #tpu.memory_space<vmem>>, %arg5: memref<1x128xf32, #tpu.memory_space<vmem>>, %arg6: memref<1x128xf32, #tpu.memory_space<vmem>>, %arg7: memref<1x128xf32, #tpu.memory_space<vmem>>, %arg8: memref<16x128xbf16, #tpu.memory_space<vmem>>) attributes {dimension_semantics = [#tpu.dimension_semantics<parallel>], iteration_bounds = array<i64: 2>, scalar_prefetch = 0 : i64, scratch_operands = 0 : i64, tpu.core_type = #tpu.core_type<tc>, window_params = [{transform_indices = @transform_0, window_bounds = array<i64: 16, 176>}, {transform_indices = @transform_1, window_bounds = array<i64: 16, 8>}, {pipeline_mode = #tpu.pipeline_mode<synchronous>, transform_indices = @transform_2, window_bounds = array<i64: 176, 128>}, {pipeline_mode = #tpu.pipeline_mode<synchronous>, transform_indices = @transform_3, window_bounds = array<i64: 8, 128>}, {pipeline_mode = #tpu.pipeline_mode<synchronous>, transform_indices = @transform_4, window_bounds = array<i64: 1, 128>}, {pipeline_mode = #tpu.pipeline_mode<synchronous>, transform_indices = @transform_5, window_bounds = array<i64: 1, 128>}, {pipeline_mode = #tpu.pipeline_mode<synchronous>, transform_indices = @transform_6, window_bounds = array<i64: 1, 128>}, {transform_indices = @transform_7, window_bounds = array<i64: 16, 128>}]} {
    %c0 = arith.constant 0 : index
    %c0_0 = arith.constant 0 : index
    %0 = vector.load %arg1[%c0, %c0_0] : memref<16x176xbf16, #tpu.memory_space<vmem>>, vector<16x176xbf16>
    %c0_1 = arith.constant 0 : index
    %c0_2 = arith.constant 0 : index
    %1 = vector.load %arg3[%c0_1, %c0_2] : memref<176x128xbf16, #tpu.memory_space<vmem>>, vector<176x128xbf16>
    %cst = arith.constant dense<0.000000e+00> : vector<16x128xf32>
    %2 = tpu.matmul %0, %1, %cst {dimension_numbers = #tpu.dot_dimension_numbers<[1], [0], [0], [1], [0, 0, 1, 1], [], []>} : vector<16x176xbf16>, vector<176x128xbf16>, vector<16x128xf32> -> vector<16x128xf32>
    %c0_3 = arith.constant 0 : index
    %c0_4 = arith.constant 0 : index
    %3 = vector.load %arg2[%c0_3, %c0_4] : memref<16x8xf32, #tpu.memory_space<vmem>>, vector<16x8xf32>
    %c0_5 = arith.constant 0 : index
    %c0_6 = arith.constant 0 : index
    %4 = vector.load %arg4[%c0_5, %c0_6] : memref<8x128xf32, #tpu.memory_space<vmem>>, vector<8x128xf32>
    %cst_7 = arith.constant dense<0.000000e+00> : vector<16x128xf32>
    %5 = tpu.matmul %3, %4, %cst_7 {dimension_numbers = #tpu.dot_dimension_numbers<[1], [0], [0], [1], [0, 0, 1, 1], [], []>} : vector<16x8xf32>, vector<8x128xf32>, vector<16x128xf32> -> vector<16x128xf32>
    %6 = arith.addf %2, %5 : vector<16x128xf32>
    %c0_8 = arith.constant 0 : index
    %c0_9 = arith.constant 0 : index
    %7 = vector.load %arg5[%c0_8, %c0_9] : memref<1x128xf32, #tpu.memory_space<vmem>>, vector<1x128xf32>
    %8 = vector.broadcast %7 : vector<1x128xf32> to vector<16x128xf32>
    %9 = arith.addf %6, %8 : vector<16x128xf32>
    %cst_10 = arith.constant dense<0.000000e+00> : vector<16xf32>
    %10 = vector.multi_reduction <add>, %9, %cst_10 [1] : vector<16x128xf32> to vector<16xf32>
    %11 = vector.shape_cast %10 : vector<16xf32> to vector<16x1xf32>
    %cst_11 = arith.constant 3.125000e-02 : f32
    %12 = vector.broadcast %cst_11 : f32 to vector<16x1xf32>
    %13 = arith.mulf %11, %12 : vector<16x1xf32>
    %14 = arith.mulf %9, %9 : vector<16x128xf32>
    %cst_12 = arith.constant dense<0.000000e+00> : vector<16xf32>
    %15 = vector.multi_reduction <add>, %14, %cst_12 [1] : vector<16x128xf32> to vector<16xf32>
    %16 = vector.shape_cast %15 : vector<16xf32> to vector<16x1xf32>
    %cst_13 = arith.constant 3.125000e-02 : f32
    %17 = vector.broadcast %cst_13 : f32 to vector<16x1xf32>
    %18 = arith.mulf %16, %17 : vector<16x1xf32>
    %19 = arith.mulf %13, %13 : vector<16x1xf32>
    %20 = arith.subf %18, %19 : vector<16x1xf32>
    %cst_14 = arith.constant 0.000000e+00 : f32
    %21 = vector.broadcast %cst_14 : f32 to vector<16x1xf32>
    %22 = arith.maximumf %20, %21 : vector<16x1xf32>
    %23 = vector.broadcast %13 : vector<16x1xf32> to vector<16x128xf32>
    %24 = arith.subf %9, %23 : vector<16x128xf32>
    %cst_15 = arith.constant 9.99999974E-6 : f32
    %25 = vector.broadcast %cst_15 : f32 to vector<16x1xf32>
    %26 = arith.addf %22, %25 : vector<16x1xf32>
    %27 = math.rsqrt %26 : vector<16x1xf32>
    %28 = vector.broadcast %27 : vector<16x1xf32> to vector<16x128xf32>
    %29 = arith.mulf %24, %28 : vector<16x128xf32>
    %c0_16 = arith.constant 0 : index
    %c0_17 = arith.constant 0 : index
    %30 = vector.load %arg6[%c0_16, %c0_17] : memref<1x128xf32, #tpu.memory_space<vmem>>, vector<1x128xf32>
    %31 = vector.broadcast %30 : vector<1x128xf32> to vector<16x128xf32>
    %32 = arith.mulf %29, %31 : vector<16x128xf32>
    %c0_18 = arith.constant 0 : index
    %c0_19 = arith.constant 0 : index
    %33 = vector.load %arg7[%c0_18, %c0_19] : memref<1x128xf32, #tpu.memory_space<vmem>>, vector<1x128xf32>
    %34 = vector.broadcast %33 : vector<1x128xf32> to vector<16x128xf32>
    %35 = arith.addf %32, %34 : vector<16x128xf32>
    %36 = arith.truncf %35 : vector<16x128xf32> to vector<16x128xbf16>
    %c0_20 = arith.constant 0 : index
    %c0_21 = arith.constant 0 : index
    %37 = vector.load %arg8[%c0_20, %c0_21] : memref<16x128xbf16, #tpu.memory_space<vmem>>, vector<16x128xbf16>
    tpu.vector_store %arg8[%c0_20, %c0_21], %36 {strides = array<i32>} : memref<16x128xbf16, #tpu.memory_space<vmem>>, vector<16x128xbf16>,
    return
  }
  func.func @transform_0(%arg0: i32) -> (i32, i32) {
    %c0_i32 = arith.constant 0 : i32
    %c0_i32_0 = arith.constant 0 : i32
    return %arg0, %c0_i32 : i32, i32
  }
  func.func @transform_1(%arg0: i32) -> (i32, i32) {
    %c0_i32 = arith.constant 0 : i32
    %c0_i32_0 = arith.constant 0 : i32
    return %arg0, %c0_i32 : i32, i32
  }
  func.func @transform_2(%arg0: i32) -> (i32, i32) {
    %c0_i32 = arith.constant 0 : i32
    %c0_i32_0 = arith.constant 0 : i32
    %c0_i32_1 = arith.constant 0 : i32
    return %c0_i32, %c0_i32_0 : i32, i32
  }
  func.func @transform_3(%arg0: i32) -> (i32, i32) {
    %c0_i32 = arith.constant 0 : i32
    %c0_i32_0 = arith.constant 0 : i32
    %c0_i32_1 = arith.constant 0 : i32
    return %c0_i32, %c0_i32_0 : i32, i32
  }
  func.func @transform_4(%arg0: i32) -> (i32, i32) {
    %c0_i32 = arith.constant 0 : i32
    %c0_i32_0 = arith.constant 0 : i32
    %c0_i32_1 = arith.constant 0 : i32
    return %c0_i32, %c0_i32_0 : i32, i32
  }
  func.func @transform_5(%arg0: i32) -> (i32, i32) {
    %c0_i32 = arith.constant 0 : i32
    %c0_i32_0 = arith.constant 0 : i32
    %c0_i32_1 = arith.constant 0 : i32
    return %c0_i32, %c0_i32_0 : i32, i32
  }
  func.func @transform_6(%arg0: i32) -> (i32, i32) {
    %c0_i32 = arith.constant 0 : i32
    %c0_i32_0 = arith.constant 0 : i32
    %c0_i32_1 = arith.constant 0 : i32
    return %c0_i32, %c0_i32_0 : i32, i32
  }
  func.func @transform_7(%arg0: i32) -> (i32, i32) {
    %c0_i32 = arith.constant 0 : i32
    %c0_i32_0 = arith.constant 0 : i32
    return %arg0, %c0_i32 : i32, i32
  }
}

</mosaic_0001>

<llo_original>
// kernel: tpu_custom_call.1
$region0: #{tpu_custom_call.1}
  #allocation0 [shape = 'u32[]', space=smem, size = 0x4, offset = 0x4, fixed_abs, tag = 'smem constant byte address 0x4 - core index']
  #allocation1 [shape = 'u32[144,128]{1,0:T(1,128)}', space=vmem, size = 0x12000, scoped, tag = 'internal scratch']
  %s0 = inlined_call_operand.vmem [shape: bf16[32,176], index: 0, kind: input, shape index: {}]
  %s1 = inlined_call_operand.vmem [shape: f32[32,8], index: 1, kind: input, shape index: {}]
  %s2 = inlined_call_operand.hbm [shape: bf16[176,128], index: 2, kind: input, shape index: {}]
  %s3 = inlined_call_operand.vmem [shape: f32[8,128], index: 3, kind: input, shape index: {}]
  %s4 = inlined_call_operand.vmem [shape: f32[1,128], index: 4, kind: input, shape index: {}]
  %s5 = inlined_call_operand.vmem [shape: f32[1,128], index: 5, kind: input, shape index: {}]
  %s6 = inlined_call_operand.vmem [shape: f32[1,128], index: 6, kind: input, shape index: {}]
  %s7 = inlined_call_operand.hbm [shape: bf16[32,128], index: 7, kind: output, shape index: {}]
  %s8 = sld [smem:[#allocation0]]
  $region65: #{tpu_custom_call.1} parent=0
    _
  %s10 = ssub.s32 1, %s8
  %s11 = scalar_select 0, %s10, %s8
  $region1: #{tpu_custom_call.1} parent=0
    #allocation2 [shape = 'u8[45056]{0}', space=vmem, size = 0xb000, scoped, tag = 'input window, operand 2, single buffered']
    #allocation3 [shape = 's32[2]{0}', space=sflag, size = 0x8, scoped, tag = 'scoped memory for tpu_custom_call.1']
    #allocation4 [shape = 's32[2]{0}', space=sflag, size = 0x8, scoped, tag = 'scoped memory for tpu_custom_call.1']
    #allocation5 [shape = 'u8[8192]{0}', space=vmem, size = 0x2000, scoped, tag = 'output window, operand 0']
    %12 = vsyncpa [#allocation3], 0
    %13 = vsyncpa [#allocation4], 0
    %s14 = scalar_lea.sflag [#allocation4], 1
    %15 = vsyncpa %s14, 0
    loop: start=0, step=1, limit=4
    $region2: #{tpu_custom_call.1} parent=1 // loop_pre_header
      _
    $region3: #{tpu_custom_call.1} parent=1 // loop_header
      %s17 = sphi 0, %s21
      %p18 = scmp.ge.s32.totalorder %s17, 4
      %s27 = sphi 0, %s29
      %s30 = sphi 0, %s27
      %s31 = sphi 0, %s30
      %s47 = sphi 0, %s31
      %s53 = sphi 0, %s55
      %s56 = sphi 0, %s53
      %s57 = sphi 0, %s56
      %s73 = sphi 0, %s57
      %s77 = sphi 0, %s77
      %s79 = sphi 0, %s77
      %s80 = sphi 0, %s79
      %s94 = sphi 0, %s80
      %s98 = sphi 0, %s98
      %s100 = sphi 0, %s98
      %s101 = sphi 0, %s100
      %s115 = sphi 0, %s101
      %s119 = sphi 0, %s119
      %s121 = sphi 0, %s119
      %s122 = sphi 0, %s121
      %s136 = sphi 0, %s122
      %s140 = sphi 0, %s140
      %s142 = sphi 0, %s140
      %s143 = sphi 0, %s142
      %s157 = sphi 0, %s143
      %s161 = sphi 0, %s161
      %s163 = sphi 0, %s161
      %s164 = sphi 0, %s163
      %s178 = sphi 0, %s164
      %s184 = sphi 0, %s186
      %s187 = sphi 0, %s184
      %s188 = sphi 0, %s187
      %s204 = sphi 0, %s188
    $region4: #{tpu_custom_call.1} parent=1 // loop_header_branch
      %20 = sbr.rel (%p18) target = $region8
    $region5: #{tpu_custom_call.1} parent=1 // loop_body
      %s22 = ssub.s32 %s17, 1
      %s23 = ssub.s32 %s17, 2
      %s24 = sadd.s32 %s17, 1
      %s25 = ssub.s32 %s17, %s24
      %p26 = scmp.eq.s32.totalorder %s25, 0
      %s28 = sadd.s32 %s27, 1
      %s29 = scalar_select %p26, %s27, %s28
      %p32 = pneg %p26
      %p33 = scmp.eq.s32.totalorder %s17, 1
      %p34 = por %p32, %p33
      %p35 = scmp.ne.s32.totalorder %s27, %s30
      %p36 = scmp.eq.s32.totalorder %s17, 0
      %p37 = por %p35, %p36
      %p38 = scmp.ne.s32.totalorder %s27, %s30
      %p39 = scmp.eq.s32.totalorder %s22, 1
      %p40 = por %p38, %p39
      %p41 = scmp.ne.s32.totalorder %s30, %s31
      %p42 = scmp.eq.s32.totalorder %s22, 0
      %p43 = por %p41, %p42
      %p44 = scmp.ne.s32.totalorder %s30, %s31
      %p45 = scmp.eq.s32.totalorder %s23, 1
      %p46 = por %p44, %p45
      %p48 = scmp.ne.s32.totalorder %s31, %s47
      %p49 = scmp.eq.s32.totalorder %s23, 0
      %p50 = por %p48, %p49
      %s51 = ssub.s32 %s17, %s24
      %p52 = scmp.eq.s32.totalorder %s51, 0
      %s54 = sadd.s32 %s53, 1
      %s55 = scalar_select %p52, %s53, %s54
      %p58 = pneg %p52
      %p59 = scmp.eq.s32.totalorder %s17, 1
      %p60 = por %p58, %p59
      %p61 = scmp.ne.s32.totalorder %s53, %s56
      %p62 = scmp.eq.s32.totalorder %s17, 0
      %p63 = por %p61, %p62
      %p64 = scmp.ne.s32.totalorder %s53, %s56
      %p65 = scmp.eq.s32.totalorder %s22, 1
      %p66 = por %p64, %p65
      %p67 = scmp.ne.s32.totalorder %s56, %s57
      %p68 = scmp.eq.s32.totalorder %s22, 0
      %p69 = por %p67, %p68
      %p70 = scmp.ne.s32.totalorder %s56, %s57
      %p71 = scmp.eq.s32.totalorder %s23, 1
      %p72 = por %p70, %p71
      %p74 = scmp.ne.s32.totalorder %s57, %s73
      %p75 = scmp.eq.s32.totalorder %s23, 0
      %p76 = por %p74, %p75
      %s78 = sadd.s32 %s77, 1
      %p81 = scmp.eq.s32.totalorder %s17, 1
      %p82 = scmp.ne.s32.totalorder %s77, %s79
      %p83 = scmp.eq.s32.totalorder %s17, 0
      %p84 = por %p82, %p83
      %p85 = scmp.ne.s32.totalorder %s77, %s79
      %p86 = scmp.eq.s32.totalorder %s22, 1
      %p87 = por %p85, %p86
      %p88 = scmp.ne.s32.totalorder %s79, %s80
      %p89 = scmp.eq.s32.totalorder %s22, 0
      %p90 = por %p88, %p89
      %p91 = scmp.ne.s32.totalorder %s79, %s80
      %p92 = scmp.eq.s32.totalorder %s23, 1
      %p93 = por %p91, %p92
      %p95 = scmp.ne.s32.totalorder %s80, %s94
      %p96 = scmp.eq.s32.totalorder %s23, 0
      %p97 = por %p95, %p96
      %s99 = sadd.s32 %s98, 1
      %p102 = scmp.eq.s32.totalorder %s17, 1
      %p103 = scmp.ne.s32.totalorder %s98, %s100
      %p104 = scmp.eq.s32.totalorder %s17, 0
      %p105 = por %p103, %p104
      %p106 = scmp.ne.s32.totalorder %s98, %s100
      %p107 = scmp.eq.s32.totalorder %s22, 1
      %p108 = por %p106, %p107
      %p109 = scmp.ne.s32.totalorder %s100, %s101
      %p110 = scmp.eq.s32.totalorder %s22, 0
      %p111 = por %p109, %p110
      %p112 = scmp.ne.s32.totalorder %s100, %s101
      %p113 = scmp.eq.s32.totalorder %s23, 1
      %p114 = por %p112, %p113
      %p116 = scmp.ne.s32.totalorder %s101, %s115
      %p117 = scmp.eq.s32.totalorder %s23, 0
      %p118 = por %p116, %p117
      %s120 = sadd.s32 %s119, 1
      %p123 = scmp.eq.s32.totalorder %s17, 1
      %p124 = scmp.ne.s32.totalorder %s119, %s121
      %p125 = scmp.eq.s32.totalorder %s17, 0
      %p126 = por %p124, %p125
      %p127 = scmp.ne.s32.totalorder %s119, %s121
      %p128 = scmp.eq.s32.totalorder %s22, 1
      %p129 = por %p127, %p128
      %p130 = scmp.ne.s32.totalorder %s121, %s122
      %p131 = scmp.eq.s32.totalorder %s22, 0
      %p132 = por %p130, %p131
      %p133 = scmp.ne.s32.totalorder %s121, %s122
      %p134 = scmp.eq.s32.totalorder %s23, 1
      %p135 = por %p133, %p134
      %p137 = scmp.ne.s32.totalorder %s122, %s136
      %p138 = scmp.eq.s32.totalorder %s23, 0
      %p139 = por %p137, %p138
      %s141 = sadd.s32 %s140, 1
      %p144 = scmp.eq.s32.totalorder %s17, 1
      %p145 = scmp.ne.s32.totalorder %s140, %s142
      %p146 = scmp.eq.s32.totalorder %s17, 0
      %p147 = por %p145, %p146
      %p148 = scmp.ne.s32.totalorder %s140, %s142
      %p149 = scmp.eq.s32.totalorder %s22, 1
      %p150 = por %p148, %p149
      %p151 = scmp.ne.s32.totalorder %s142, %s143
      %p152 = scmp.eq.s32.totalorder %s22, 0
      %p153 = por %p151, %p152
      %p154 = scmp.ne.s32.totalorder %s142, %s143
      %p155 = scmp.eq.s32.totalorder %s23, 1
      %p156 = por %p154, %p155
      %p158 = scmp.ne.s32.totalorder %s143, %s157
      %p159 = scmp.eq.s32.totalorder %s23, 0
      %p160 = por %p158, %p159
      %s162 = sadd.s32 %s161, 1
      %p165 = scmp.eq.s32.totalorder %s17, 1
      %p166 = scmp.ne.s32.totalorder %s161, %s163
      %p167 = scmp.eq.s32.totalorder %s17, 0
      %p168 = por %p166, %p167
      %p169 = scmp.ne.s32.totalorder %s161, %s163
      %p170 = scmp.eq.s32.totalorder %s22, 1
      %p171 = por %p169, %p170
      %p172 = scmp.ne.s32.totalorder %s163, %s164
      %p173 = scmp.eq.s32.totalorder %s22, 0
      %p174 = por %p172, %p173
      %p175 = scmp.ne.s32.totalorder %s163, %s164
      %p176 = scmp.eq.s32.totalorder %s23, 1
      %p177 = por %p175, %p176
      %p179 = scmp.ne.s32.totalorder %s164, %s178
      %p180 = scmp.eq.s32.totalorder %s23, 0
      %p181 = por %p179, %p180
      %s182 = ssub.s32 %s17, %s24
      %p183 = scmp.eq.s32.totalorder %s182, 0
      %s185 = sadd.s32 %s184, 1
      %s186 = scalar_select %p183, %s184, %s185
      %p189 = pneg %p183
      %p190 = scmp.eq.s32.totalorder %s17, 1
      %p191 = por %p189, %p190
      %p192 = scmp.ne.s32.totalorder %s184, %s187
      %p193 = scmp.eq.s32.totalorder %s17, 0
      %p194 = por %p192, %p193
      %p195 = scmp.ne.s32.totalorder %s184, %s187
      %p196 = scmp.eq.s32.totalorder %s22, 1
      %p197 = por %p195, %p196
      %p198 = scmp.ne.s32.totalorder %s187, %s188
      %p199 = scmp.eq.s32.totalorder %s22, 0
      %p200 = por %p198, %p199
      %p201 = scmp.ne.s32.totalorder %s187, %s188
      %p202 = scmp.eq.s32.totalorder %s23, 1
      %p203 = por %p201, %p202
      %p205 = scmp.ne.s32.totalorder %s188, %s204
      %p206 = scmp.eq.s32.totalorder %s23, 0
      %p207 = por %p205, %p206
      %p208 = scmp.le.s32.totalorder 1, %s17
      %p209 = scmp.lt.s32.totalorder %s17, 3
      %p210 = pnand %p208, %p209
      %p211 = pneg %p210
      // Predicated region
      $region9: #{tpu_custom_call.1} parent=5 // pred_check
        _
      $region10: #{tpu_custom_call.1} parent=5 // pred_check_branch
        %213 = sbr.rel (%p210) target = $region12
      $region11: #{tpu_custom_call.1} parent=5 // pred_region
        %s214 = ssub.s32 %s17, 1
        // Predicated region
        $region13: #{tpu_custom_call.1} parent=11 // pred_check
          %p215 = pneg %p90
        $region14: #{tpu_custom_call.1} parent=11 // pred_check_branch
          %217 = sbr.rel (%p215) target = $region16
        $region15: #{tpu_custom_call.1} parent=11 // pred_region
          %s219 = ssub.s32 1408, 1408
          %220 = vsyncadd [#allocation3], %s219
          %s221 = sshll.u32 [#allocation2], 4
          %s222 = int_to_ptr.vmem [resolvable:$true] %s221
          %227 = dma.hbm_to_vmem [thread:$0]  %s2, 1408, %s222, [#allocation3], 64, 64, 4
        $region16: #{tpu_custom_call.1} parent=11 // pred_fallthru
          _
        // Predicated region
        $region17: #{tpu_custom_call.1} parent=11 // pred_check
          %p228 = pneg %p111
        $region18: #{tpu_custom_call.1} parent=11 // pred_check_branch
          %230 = sbr.rel (%p228) target = $region20
        $region19: #{tpu_custom_call.1} parent=11 // pred_region
          _
        $region20: #{tpu_custom_call.1} parent=11 // pred_fallthru
          _
        // Predicated region
        $region21: #{tpu_custom_call.1} parent=11 // pred_check
          %p231 = pneg %p132
        $region22: #{tpu_custom_call.1} parent=11 // pred_check_branch
          %233 = sbr.rel (%p231) target = $region24
        $region23: #{tpu_custom_call.1} parent=11 // pred_region
          _
        $region24: #{tpu_custom_call.1} parent=11 // pred_fallthru
          _
        // Predicated region
        $region25: #{tpu_custom_call.1} parent=11 // pred_check
          %p234 = pneg %p153
        $region26: #{tpu_custom_call.1} parent=11 // pred_check_branch
          %236 = sbr.rel (%p234) target = $region28
        $region27: #{tpu_custom_call.1} parent=11 // pred_region
          _
        $region28: #{tpu_custom_call.1} parent=11 // pred_fallthru
          _
        // Predicated region
        $region29: #{tpu_custom_call.1} parent=11 // pred_check
          %p237 = pneg %p174
        $region30: #{tpu_custom_call.1} parent=11 // pred_check_branch
          %239 = sbr.rel (%p237) target = $region32
        $region31: #{tpu_custom_call.1} parent=11 // pred_region
          _
        $region32: #{tpu_custom_call.1} parent=11 // pred_fallthru
          _
      $region12: #{tpu_custom_call.1} parent=5 // pred_fallthru
        _
      %p240 = scmp.lt.s32.totalorder %s17, 2
      // Predicated region
      $region33: #{tpu_custom_call.1} parent=5 // pred_check
        %p241 = pneg %p240
      $region34: #{tpu_custom_call.1} parent=5 // pred_check_branch
        %243 = sbr.rel (%p241) target = $region36
      $region35: #{tpu_custom_call.1} parent=5 // pred_region
        // Predicated region
        $region37: #{tpu_custom_call.1} parent=35 // pred_check
          %p244 = pneg %p37
        $region38: #{tpu_custom_call.1} parent=35 // pred_check_branch
          %246 = sbr.rel (%p244) target = $region40
        $region39: #{tpu_custom_call.1} parent=35 // pred_region
          %s247 = smul.u32 2, %s17
          %p248 = scmp.lt.s32.totalorder %s247, 3
          %s249 = scalar_select %p248, %s247, 3
          %s250 = smul.addr %s249, 2
          %s251 = smul.addr %s250, 4
          %s252 = scalar_lea.vmem %s0, %s251
          %s253 = smul.u32 2, %s17
        $region40: #{tpu_custom_call.1} parent=35 // pred_fallthru
          _
        // Predicated region
        $region41: #{tpu_custom_call.1} parent=35 // pred_check
          %p254 = pneg %p63
        $region42: #{tpu_custom_call.1} parent=35 // pred_check_branch
          %256 = sbr.rel (%p254) target = $region44
        $region43: #{tpu_custom_call.1} parent=35 // pred_region
          %s257 = smul.u32 2, %s17
          %p258 = scmp.lt.s32.totalorder %s257, 3
          %s259 = scalar_select %p258, %s257, 3
          %s260 = smul.addr %s259, 8
          %s261 = scalar_lea.vmem %s1, %s260
          %s262 = smul.u32 2, %s17
        $region44: #{tpu_custom_call.1} parent=35 // pred_fallthru
          _
      $region36: #{tpu_custom_call.1} parent=5 // pred_fallthru
        _
      %p263 = scmp.le.s32.totalorder 1, %s17
      %p264 = scmp.lt.s32.totalorder %s17, 3
      %p265 = pnand %p263, %p264
      %p266 = pneg %p265
      // Predicated region
      $region45: #{tpu_custom_call.1} parent=5 // pred_check
        _
      $region46: #{tpu_custom_call.1} parent=5 // pred_check_branch
        %268 = sbr.rel (%p265) target = $region48
      $region47: #{tpu_custom_call.1} parent=5 // pred_region
        %s269 = ssub.s32 %s17, 1
        // Predicated region
        $region49: #{tpu_custom_call.1} parent=47 // pred_check
          %p270 = pneg %p90
        $region50: #{tpu_custom_call.1} parent=47 // pred_check_branch
          %272 = sbr.rel (%p270) target = $region52
        $region51: #{tpu_custom_call.1} parent=47 // pred_region
          %273 = dma.done [#allocation3], 1408
        $region52: #{tpu_custom_call.1} parent=47 // pred_fallthru
          _
        %s274 = smul.u32 2, %s22
        %p275 = scmp.lt.s32.totalorder %s274, 3
        %s276 = scalar_select %p275, %s274, 3
        %s277 = smul.addr %s276, 2
        %s278 = smul.addr %s277, 4
        %s279 = scalar_lea.vmem %s0, %s278
        %p280 = pneg %p43
        %p281 = pneg %p40
        %s282 = smul.u32 2, %s22
        %p283 = scmp.lt.s32.totalorder %s282, 3
        %s284 = scalar_select %p283, %s282, 3
        %s285 = smul.addr %s284, 8
        %s286 = scalar_lea.vmem %s1, %s285
        %p287 = pneg %p69
        %p288 = pneg %p66
        %p289 = pneg %p90
        %p290 = pneg %p87
        %p291 = pneg %p111
        %p292 = pneg %p108
        %p293 = pneg %p132
        %p294 = pneg %p129
        %p295 = pneg %p153
        %p296 = pneg %p150
        %p297 = pneg %p174
        %p298 = pneg %p171
        %p299 = pneg %p200
        %p300 = pneg %p197
        %s301 = sand.u32 %s187, 1
        %s302 = scalar_lea.sflag [#allocation4], %s301
        %s303 = sand.u32 %s187, 1
        %s304 = smul.addr %s303, 8
        %s305 = scalar_lea.vmem [#allocation5], %s304
        %s306 = smul.u32 2, %s22
        %p307 = scmp.lt.s32.totalorder %s306, 3
        %s308 = scalar_select %p307, %s306, 3
        %s309 = smul.addr %s308, 2
        %s310 = smul.addr %s309, 4
        %s311 = scalar_lea.vmem %s0, %s310
        %s312 = smul.u32 2, %s22
        %s313 = smul.u32 2, %s22
        %p314 = scmp.lt.s32.totalorder %s313, 3
        %s315 = scalar_select %p314, %s313, 3
        %s316 = smul.addr %s315, 8
        %s317 = scalar_lea.vmem %s1, %s316
        %s318 = smul.u32 2, %s22
        %s319 = smul.u32 2, %s22
        %v321 = vld [vmem:[%s311] sm:$0xff]
        %v322 = vld [vmem:[%s311 + $0x8] sm:$0xff]
        %v323 = vld [vmem:[#allocation2] sm:$0xf]
        %v324 = vld [vmem:[#allocation2 + $0x4] sm:$0xf]
        %v325 = vld [vmem:[#allocation2 + $0x8] sm:$0xf]
        %v326 = vld [vmem:[#allocation2 + $0xc] sm:$0xf]
        %v327 = vld [vmem:[#allocation2 + $0x10] sm:$0xf]
        %v328 = vld [vmem:[#allocation2 + $0x14] sm:$0xf]
        %v329 = vld [vmem:[#allocation2 + $0x18] sm:$0xf]
        %v330 = vld [vmem:[#allocation2 + $0x1c] sm:$0xf]
        %v331 = vld [vmem:[#allocation2 + $0x20] sm:$0xf]
        %v332 = vld [vmem:[#allocation2 + $0x24] sm:$0xf]
        %v333 = vld [vmem:[#allocation2 + $0x28] sm:$0xf]
        %v334 = vld [vmem:[#allocation2 + $0x2c] sm:$0xf]
        %v335 = vld [vmem:[#allocation2 + $0x30] sm:$0xf]
        %v336 = vld [vmem:[#allocation2 + $0x34] sm:$0xf]
        %v337 = vld [vmem:[#allocation2 + $0x38] sm:$0xf]
        %v338 = vld [vmem:[#allocation2 + $0x3c] sm:$0xf]
        %v339 = vld [vmem:[#allocation2 + $0x40] sm:$0xf]
        %v340 = vld [vmem:[#allocation2 + $0x44] sm:$0xf]
        %v341 = vld [vmem:[#allocation2 + $0x48] sm:$0xf]
        %v342 = vld [vmem:[#allocation2 + $0x4c] sm:$0xf]
        %v343 = vld [vmem:[#allocation2 + $0x50] sm:$0xf]
        %v344 = vld [vmem:[#allocation2 + $0x54] sm:$0xf]
        %v345 = vld [vmem:[%s317] sm:$0xff]
        %v346 = vld [vmem:[%s317 + $0x8] sm:$0xff]
        %v347 = vld [vmem:[%s3] sm:$0xff]
        %vm348 = vcmask 64512
        %v350 = vsel %vm348, %v345, 0
        %v353 = vsel %vm348, %v346, 0
        %355 = vmatprep.subr.mxu0 0.0
        %356 = vmatpush1.msra.mxu0 %v347
        %357 = vmatprep.subr.mxu0 0.0
        %358 = vmatpush1.msra.mxu0 0.0
        %359 = vmatprep.subr.mxu0 0.0
        %360 = vmatpush1.msra.mxu0 0.0
        %361 = vmatprep.subr.mxu0 0.0
        %362 = vmatpush1.msra.mxu0 0.0
        %363 = vmatprep.subr.mxu0 0.0
        %364 = vmatpush1.msra.mxu0 0.0
        %365 = vmatprep.subr.mxu0 0.0
        %366 = vmatpush1.msra.mxu0 0.0
        %367 = vmatprep.subr.mxu0 0.0
        %368 = vmatpush1.msra.mxu0 0.0
        %369 = vmatprep.subr.mxu0 0.0
        %370 = vmatpush1.msra.mxu0 0.0
        %371 = vmatprep.subr.mxu0 0.0
        %372 = vmatpush1.msra.mxu0 0.0
        %373 = vmatprep.subr.mxu0 0.0
        %374 = vmatpush1.msra.mxu0 0.0
        %375 = vmatprep.subr.mxu0 0.0
        %376 = vmatpush1.msra.mxu0 0.0
        %377 = vmatprep.subr.mxu0 0.0
        %378 = vmatpush1.msra.mxu0 0.0
        %379 = vmatprep.subr.mxu0 0.0
        %380 = vmatpush1.msra.mxu0 0.0
        %381 = vmatprep.subr.mxu0 0.0
        %382 = vmatpush1.msra.mxu0 0.0
        %383 = vmatprep.subr.mxu0 0.0
        %384 = vmatpush1.msra.mxu0 0.0
        %385 = vmatprep.subr.mxu0 0.0
        %386 = vmatpush1.msra.mxu0 0.0
        %387 = vmatprep.subr.mxu0 0.0
        %388 = vmatpush1.msra.mxu0 0.0
        %389 = vmatprep.subr.mxu0 0.0
        %390 = vmatpush1.msra.mxu0 0.0
        %391 = vmatprep.subr.mxu0 0.0
        %392 = vmatpush1.msra.mxu0 0.0
        %393 = vmatprep.subr.mxu0 0.0
        %394 = vmatpush1.msra.mxu0 0.0
        %395 = vmatprep.subr.mxu0 0.0
        %396 = vmatpush1.msra.mxu0 0.0
        %397 = vmatprep.subr.mxu0 0.0
        %398 = vmatpush1.msra.mxu0 0.0
        %399 = vmatprep.subr.mxu0 0.0
        %400 = vmatpush1.msra.mxu0 0.0
        %401 = vmatprep.subr.mxu0 0.0
        %402 = vmatpush1.msra.mxu0 0.0
        %403 = vmatprep.subr.mxu0 0.0
        %404 = vmatpush1.msra.mxu0 0.0
        %405 = vmatprep.subr.mxu0 0.0
        %406 = vmatpush1.msra.mxu0 0.0
        %407 = vmatprep.subr.mxu0 0.0
        %408 = vmatpush1.msra.mxu0 0.0
        %409 = vmatprep.subr.mxu0 0.0
        %410 = vmatpush1.msra.mxu0 0.0
        %411 = vmatprep.subr.mxu0 0.0
        %412 = vmatpush1.msra.mxu0 0.0
        %413 = vmatprep.subr.mxu0 0.0
        %414 = vmatpush1.msra.mxu0 0.0
        %415 = vmatprep.subr.mxu0 0.0
        %416 = vmatpush1.msra.mxu0 0.0
        %417 = vmatprep.subr.mxu0 0.0
        %418 = vmatpush1.msra.mxu0 0.0
        %419 = vmatprep.mubr.f32.mxu0 0.0
        %420 = vmatmul.mubr.f32.gmra.mrb[0].mxu0 %v350
        %v421 = vpop.f32.mrb[0].mxu0
        %v422 = vadd.f32 0.0, %v421
        %v423 = vpop.f32.mrb[0].mxu0
        %424 = vmatprep.mubr.f32.mxu0 0.0
        %425 = vmatmul.mubr.f32.gmra.mrb[0].mxu0 %v353
        %v426 = vpop.f32.mrb[0].mxu0
        %v427 = vadd.f32 0.0, %v426
        %v428 = vpop.f32.mrb[0].mxu0
        %429 = vdwg.mxu0
        %v432 = vunpack.c.l.b16 %v321
        %v433 = vunpack.c.h.b16 %v321
        %v434 = vunpack.c.l.b16 %v322
        %v435 = vunpack.c.h.b16 %v322
        %v436 = vpack.c.b16 %v434, %v432
        %v437 = vpack.c.b16 %v435, %v433
        %v461 = vunpack.c.l.b16 %v323
        %v462 = vunpack.c.l.b16 %v324
        %v463 = vunpack.c.l.b16 %v325
        %v464 = vunpack.c.l.b16 %v326
        %v465 = vunpack.c.l.b16 %v327
        %v466 = vunpack.c.l.b16 %v328
        %v467 = vunpack.c.l.b16 %v329
        %v468 = vunpack.c.l.b16 %v330
        %v469 = vunpack.c.l.b16 %v331
        %v470 = vunpack.c.l.b16 %v332
        %v471 = vunpack.c.l.b16 %v333
        %v472 = vunpack.c.l.b16 %v334
        %v473 = vunpack.c.l.b16 %v335
        %v474 = vunpack.c.l.b16 %v336
        %v475 = vunpack.c.l.b16 %v337
        %v476 = vunpack.c.l.b16 %v338
        %v477 = vunpack.c.l.b16 %v339
        %v478 = vunpack.c.l.b16 %v340
        %v479 = vunpack.c.l.b16 %v341
        %v480 = vunpack.c.l.b16 %v342
        %v481 = vunpack.c.l.b16 %v343
        %v482 = vunpack.c.l.b16 %v344
        %v483 = vpack.c.b16 %v462, %v461
        %v484 = vpack.c.b16 %v464, %v463
        %v485 = vpack.c.b16 %v466, %v465
        %v486 = vpack.c.b16 %v468, %v467
        %v487 = vpack.c.b16 %v470, %v469
        %v488 = vpack.c.b16 %v472, %v471
        %v489 = vpack.c.b16 %v474, %v473
        %v490 = vpack.c.b16 %v476, %v475
        %v491 = vpack.c.b16 %v478, %v477
        %v492 = vpack.c.b16 %v480, %v479
        %v493 = vpack.c.b16 %v482, %v481
        %vm505 = vcmask 392192
        %v507 = vsel %vm505, %v437, 0
        %509 = vmatprep.subr.bf16.mxu0 0
        %510 = vmatpush1.bf16.msra.mxu0 %v483
        %511 = vmatprep.subr.bf16.mxu0 0
        %512 = vmatpush1.bf16.msra.mxu0 %v484
        %513 = vmatprep.subr.bf16.mxu0 0
        %514 = vmatpush1.bf16.msra.mxu0 %v485
        %515 = vmatprep.subr.bf16.mxu0 0
        %516 = vmatpush1.bf16.msra.mxu0 %v486
        %517 = vmatprep.subr.bf16.mxu0 0
        %518 = vmatpush1.bf16.msra.mxu0 %v487
        %519 = vmatprep.subr.bf16.mxu0 0
        %520 = vmatpush1.bf16.msra.mxu0 %v488
        %521 = vmatprep.subr.bf16.mxu0 0
        %522 = vmatpush1.bf16.msra.mxu0 %v489
        %523 = vmatprep.subr.bf16.mxu0 0
        %524 = vmatpush1.bf16.msra.mxu0 %v490
        %525 = vmatprep.subr.bf16.mxu0 0
        %526 = vmatpush1.bf16.msra.mxu0 %v491
        %527 = vmatprep.subr.bf16.mxu0 0
        %528 = vmatpush1.bf16.msra.mxu0 %v492
        %529 = vmatprep.subr.bf16.mxu0 0
        %530 = vmatpush1.bf16.msra.mxu0 %v493
        %531 = vmatprep.subr.bf16.mxu0 0
        %532 = vmatpush1.bf16.msra.mxu0 0
        %533 = vmatprep.subr.bf16.mxu0 0
        %534 = vmatpush1.bf16.msra.mxu0 0
        %535 = vmatprep.subr.bf16.mxu0 0
        %536 = vmatpush1.bf16.msra.mxu0 0
        %537 = vmatprep.subr.bf16.mxu0 0
        %538 = vmatpush1.bf16.msra.mxu0 0
        %539 = vmatprep.subr.bf16.mxu0 0
        %540 = vmatpush1.bf16.msra.mxu0 0
        %541 = vmatprep.mubr.bf16.mxu0 %v507
        %542 = vmatmul.mubr.bf16.gmra.mrb[0].mxu0 %v436
        %v543 = vpop.f32.mrb[0].mxu0
        %v544 = vadd.f32 %v422, %v543
        %v545 = vpop.f32.mrb[0].mxu0
        %v546 = vpop.f32.mrb[0].mxu0
        %v547 = vadd.f32 %v427, %v546
        %v548 = vpop.f32.mrb[0].mxu0
        %549 = vdwg.mxu0
        %v550 = vld [vmem:[%s4] sm:$0x1]
        %v552 = vlaneseq
        %v553 = vshrl.u32 %v552, 7
        %v554 = vsub.s32 0, %v553
        %v555 = vrot.slane %v550, %v554
        %v557 = vadd.f32 %v544, %v555
        %v558 = vadd.f32 %v547, %v555
        %559 = vadd.xlane.f32.xlu0 %v557
        %v560 = vpop.xlane.xlu0 %559
        %561 = vadd.xlane.f32.xlu0 %v558
        %v562 = vpop.xlane.xlu0 %561
        %v563 = vmul.f32 %v560, 0.03125
        %v564 = vmul.f32 %v562, 0.03125
        %v565 = vmul.f32 %v557, %v557
        %v566 = vmul.f32 %v558, %v558
        %567 = vadd.xlane.f32.xlu0 %v565
        %v568 = vpop.xlane.xlu0 %567
        %569 = vadd.xlane.f32.xlu0 %v566
        %v570 = vpop.xlane.xlu0 %569
        %v571 = vmul.f32 %v568, 0.03125
        %v572 = vmul.f32 %v570, 0.03125
        %v573 = vmul.f32 %v563, %v563
        %v574 = vmul.f32 %v564, %v564
        %v575 = vsub.f32 %v571, %v573
        %v576 = vsub.f32 %v572, %v574
        %v577 = vmax.f32 %v575, 0.0
        %v578 = vmax.f32 %v576, 0.0
        %v579 = vsub.f32 %v557, %v563
        %v580 = vsub.f32 %v558, %v564
        %v581 = vadd.f32 %v577, 1e-05
        %v582 = vadd.f32 %v578, 1e-05
        %v583 = vrsqrt.pop %v581
        %v584 = vrsqrt.pop %v582
        %v585 = vmul.f32 %v579, %v583
        %v586 = vmul.f32 %v580, %v584
        %v587 = vld [vmem:[%s5] sm:$0x1]
        %v589 = vlaneseq
        %v590 = vshrl.u32 %v589, 7
        %v591 = vsub.s32 0, %v590
        %v592 = vrot.slane %v587, %v591
        %v594 = vmul.f32 %v585, %v592
        %v595 = vmul.f32 %v586, %v592
        %v596 = vld [vmem:[%s6] sm:$0x1]
        %v598 = vlaneseq
        %v599 = vshrl.u32 %v598, 7
        %v600 = vsub.s32 0, %v599
        %v601 = vrot.slane %v596, %v600
        %v603 = vadd.f32 %v594, %v601
        %v604 = vadd.f32 %v595, %v601
        %v605 = vpack.c.bf16 %v604, %v603
        %v607 = vunpack.c.l.b16 %v605
        %v608 = vunpack.c.h.b16 %v605
        %v609 = vpack.c.b16 %v607, %v607
        %v610 = vpack.c.b16 %v608, %v608
        %613 = vst [vmem:[%s305] sm:$0xf] %v609
        %614 = vst [vmem:[%s305 + $0x4] sm:$0xf] %v610
        %s615 = sand.u32 %s187, 1
        %s616 = scalar_lea.sflag [#allocation4], %s615
        %s617 = sand.u32 %s187, 1
        %s618 = smul.addr %s617, 8
        %s619 = scalar_lea.vmem [#allocation5], %s618
        // Predicated region
        $region53: #{tpu_custom_call.1} parent=47 // pred_check
          %p620 = pneg %p197
        $region54: #{tpu_custom_call.1} parent=47 // pred_check_branch
          %622 = sbr.rel (%p620) target = $region56
        $region55: #{tpu_custom_call.1} parent=47 // pred_region
          %s623 = smul.u32 2, %s22
          %s625 = ssub.s32 128, 128
          %626 = vsyncadd %s616, %s625
          %s627 = smul.addr %s623, 64
          %s628 = scalar_lea.hbm %s7, %s627
          %s629 = sshll.u32 %s619, 4
          %s630 = int_to_ptr.vmem [resolvable:$true] %s629
          %635 = dma.vmem_to_hbm [thread:$0]  %s630, 128, %s628, %s616, 64, 64, 4
        $region56: #{tpu_custom_call.1} parent=47 // pred_fallthru
          _
      $region48: #{tpu_custom_call.1} parent=5 // pred_fallthru
        _
      %p636 = scmp.le.s32.totalorder 2, %s17
      // Predicated region
      $region57: #{tpu_custom_call.1} parent=5 // pred_check
        %p637 = pneg %p636
      $region58: #{tpu_custom_call.1} parent=5 // pred_check_branch
        %639 = sbr.rel (%p637) target = $region60
      $region59: #{tpu_custom_call.1} parent=5 // pred_region
        %s640 = ssub.s32 %s17, 2
        // Predicated region
        $region61: #{tpu_custom_call.1} parent=59 // pred_check
          %p641 = pneg %p203
        $region62: #{tpu_custom_call.1} parent=59 // pred_check_branch
          %643 = sbr.rel (%p641) target = $region64
        $region63: #{tpu_custom_call.1} parent=59 // pred_region
          %s644 = sand.u32 %s188, 1
          %s645 = scalar_lea.sflag [#allocation4], %s644
          %s646 = sand.u32 %s188, 1
          %s647 = smul.addr %s646, 8
          %s648 = scalar_lea.vmem [#allocation5], %s647
          %649 = dma.done %s645, 128
        $region64: #{tpu_custom_call.1} parent=59 // pred_fallthru
          _
      $region60: #{tpu_custom_call.1} parent=5 // pred_fallthru
        _
    $region6: #{tpu_custom_call.1} parent=1 // loop_footer
      %s21 = sadd.s32 1, %s17
    $region7: #{tpu_custom_call.1} parent=1 // loop_footer_branch
      %16 = sbr.rel target = $region3
    $region8: #{tpu_custom_call.1} parent=1 // loop_exit
      _
    %650 = vsyncpa [#allocation3], 1
    %s651 = scalar_lea.sflag [#allocation3], 1
    %652 = vsyncpa %s651, 1
    %653 = vsyncpa [#allocation4], 1
    %s654 = scalar_lea.sflag [#allocation4], 1
    %655 = vsyncpa %s654, 1

</llo_original>
